<compile_context>
chip_gen: v7x
topology: tpu7x:2x2x1
jax: 0.10.0
libtpu: 0.0.40
codegen_flags: <defaults>
</compile_context>

<pallas_src>
import jax
import jax.numpy as jnp
from jax.experimental import pallas as pl
from jax.experimental.pallas import tpu as pltpu


_LANES = 128
_SUBLANES = 8
# Below this many output elements, a single exact-shape block (no grid, no
# post-kernel slice) is cheapest; above it we go sublane-dense + tiled.
_SMALL_BATCH_THRESHOLD = 16 * 1024
# ~1 MiB f32 output tile (double-buffered -> 2 MiB VMEM), well under every
# chip's scoped-VMEM default, big enough to sit at the HBM-writeback roofline.
_BLOCK_ROWS = 2048


def _fill_kernel(pred_ref, o_ref):
    # pred_ref: (1, 1) float32 scalar in SMEM (runtime value -> no recompiles
    # when the prediction value changes). o_ref: VMEM output tile.
    o_ref[...] = jnp.full(o_ref.shape, pred_ref[0, 0], dtype=o_ref.dtype)


def _round_up(n, m):
    return ((n + m - 1) // m) * m


def _small_batch_path(pred_arr, batch):
    # Exact-shape output: one masked tail store inside the kernel beats an
    # extra post-kernel slice op (which would re-read + re-write the output).
    out = pl.pallas_call(
        _fill_kernel,
        out_shape=jax.ShapeDtypeStruct((1, batch), jnp.float32),
        in_specs=[pl.BlockSpec(memory_space=pltpu.MemorySpace.SMEM)],
        out_specs=pl.BlockSpec(memory_space=pltpu.MemorySpace.VMEM),
        cost_estimate=pl.CostEstimate(
            flops=0, transcendentals=0, bytes_accessed=4 * batch),
    )(pred_arr)
    # (1, batch) -> (batch,) is bitcast-compatible: pure metadata, no copy.
    return out.reshape(batch)


def _large_batch_path(pred_arr, batch):
    # Sublane/lane-dense layout: (rows, 128) f32 with rows a multiple of 8 so
    # every store is a full unmasked (8,128) vreg.
    rows = _round_up(pl.cdiv(batch, _LANES), _SUBLANES)
    block_rows = min(_BLOCK_ROWS, rows)
    grid = (pl.cdiv(rows, block_rows),)

    out = pl.pallas_call(
        _fill_kernel,
        out_shape=jax.ShapeDtypeStruct((rows, _LANES), jnp.float32),
        grid=grid,
        in_specs=[pl.BlockSpec(memory_space=pltpu.MemorySpace.SMEM)],
        out_specs=pl.BlockSpec((block_rows, _LANES), lambda i: (i, 0)),
        compiler_params=pltpu.CompilerParams(
            dimension_semantics=("parallel",)),  # v7x: 2 TCs split the memset
        cost_estimate=pl.CostEstimate(
            flops=0, transcendentals=0, bytes_accessed=4 * rows * _LANES),
    )(pred_arr)

    flat = out.reshape(rows * _LANES)  # bitcast-compatible flatten
    if rows * _LANES == batch:
        return flat
    # Tail slice only when batch is not a multiple of 128 (padding lanes also
    # hold `pred`, so this is purely a shape fix-up, not a numeric one).
    return flat[:batch]


def average_baseline_forward(x, static_pred):
    """Pallas equivalent of AverageBaseline.forward(x)."""
    if static_pred is None:
        raise ValueError(
            "Specify pred_class before using AverageBaseline for prediction")
    batch = x.shape[0]
    # Runtime scalar in SMEM -> changing static_pred does not retrace.
    pred_arr = jnp.asarray(static_pred, dtype=jnp.float32).reshape(1, 1)
    if batch < _SMALL_BATCH_THRESHOLD:
        return _small_batch_path(pred_arr, batch)
    return _large_batch_path(pred_arr, batch)


if __name__ == "__main__":
    key = jax.random.PRNGKey(0)
    # Small NCHW input consistent with the module; forward only uses batch dim.
    x = jax.random.normal(key, (2, 4, 16, 16), dtype=jnp.float32)
    static_pred = 0.375

    preds = average_baseline_forward(x, static_pred)
    preds = jax.block_until_ready(preds)
    expected = jnp.ones((x.shape[0],), dtype=jnp.float32) * static_pred
    assert preds.shape == (x.shape[0],)
    assert preds.dtype == jnp.float32
    assert bool(jnp.allclose(preds, expected))

    # Also exercise the tiled large-batch path (non-multiple-of-128 batch).
    big_batch = _SMALL_BATCH_THRESHOLD + 5
    x_big = jnp.zeros((big_batch, 1), dtype=jnp.float32)
    preds_big = average_baseline_forward(x_big, static_pred)
    preds_big = jax.block_until_ready(preds_big)
    assert preds_big.shape == (big_batch,)
    assert bool(jnp.allclose(preds_big, static_pred))

    print("KERNEL_OK")
</pallas_src>

<mosaic_0001>
module attributes {stable_mosaic.version = 11 : i64} {
  func.func @_fill_kernel(%arg0: memref<1x1xf32, #tpu.memory_space<smem>>, %arg1: memref<1x2xf32, #tpu.memory_space<vmem>>) attributes {dimension_semantics = [], scalar_prefetch = 0 : i64, scratch_operands = 0 : i64, tpu.core_type = #tpu.core_type<tc>} {
    %c0 = arith.constant 0 : index
    %c0_0 = arith.constant 0 : index
    %0 = memref.load %arg0[%c0, %c0_0] : memref<1x1xf32, #tpu.memory_space<smem>>
    %1 = vector.broadcast %0 : f32 to vector<1x2xf32>
    %c0_1 = arith.constant 0 : index
    %c0_2 = arith.constant 0 : index
    %2 = vector.load %arg1[%c0_1, %c0_2] : memref<1x2xf32, #tpu.memory_space<vmem>>, vector<1x2xf32>
    tpu.vector_store %arg1[%c0_1, %c0_2], %1 {strides = array<i32>} : memref<1x2xf32, #tpu.memory_space<vmem>>, vector<1x2xf32>,
    return
  }
}

</mosaic_0001>

<llo_original>
// kernel: tpu_custom_call.1
$region0: #{tpu_custom_call.1}
  #allocation0 [shape = 'u32[]', space=smem, size = 0x4, offset = 0x4, fixed_abs, tag = 'smem constant byte address 0x4 - core index']
  #allocation1 [shape = 'u32[144,128]{1,0:T(1,128)}', space=vmem, size = 0x12000, scoped, tag = 'internal scratch']
  #allocation2 [shape = 'f32[1,1]{1,0:T(1,128)S(6)}', space=smem, size = 0x200, scoped, tag = 'scoped memory for tpu_custom_call.1']
  %s0 = inlined_call_operand.<no memory space> [shape: f32[1,1], index: 0, kind: input, shape index: {}]
  %s1 = inlined_call_operand.hbm [shape: f32[1,2], index: 1, kind: output, shape index: {}]
  %s2 = sld [smem:[#allocation0]]
  $region14: #{tpu_custom_call.1} parent=0
    _
  %s4 = ssub.s32 1, %s2
  %s5 = scalar_select 0, %s4, %s2
  %6 = sst [smem:[#allocation2]] %s0
  $region1: #{tpu_custom_call.1} parent=0
    #allocation3 [shape = 'u8[512]{0}', space=vmem, size = 0x400, scoped, tag = 'output window, operand 0, single buffered']
    #allocation4 [shape = 's32[1]{0}', space=sflag, size = 0x4, scoped, tag = 'scoped memory for tpu_custom_call.1']
    %7 = vsyncpa [#allocation4], 0
    // Predicated region
    $region2: #{tpu_custom_call.1} parent=1 // pred_check
      _
    $region3: #{tpu_custom_call.1} parent=1 // pred_check_branch
      %9 = sbr.rel (0) target = $region5
    $region4: #{tpu_custom_call.1} parent=1 // pred_region
      _
    $region5: #{tpu_custom_call.1} parent=1 // pred_fallthru
      _
    %s10 = sld [smem:[#allocation2]]
    %v11 = vstv %s10
    %vm12 = vcmask 8192
    %13 = vst.msk [vmem:[#allocation3] sm:$0x1] %vm12, %v11
    // Predicated region
    $region6: #{tpu_custom_call.1} parent=1 // pred_check
      _
    $region7: #{tpu_custom_call.1} parent=1 // pred_check_branch
      %15 = sbr.rel (0) target = $region9
    $region8: #{tpu_custom_call.1} parent=1 // pred_region
      %s17 = ssub.s32 16, 16
      %18 = vsyncadd [#allocation4], %s17
      %s20 = sshll.u32 [#allocation3], 4
      %s21 = int_to_ptr.vmem [resolvable:$true] %s20
      %23 = dma.vmem_to_hbm [thread:$0]  %s21, 16, %s1, [#allocation4]
    $region9: #{tpu_custom_call.1} parent=1 // pred_fallthru
      _
    // Predicated region
    $region10: #{tpu_custom_call.1} parent=1 // pred_check
      _
    $region11: #{tpu_custom_call.1} parent=1 // pred_check_branch
      %25 = sbr.rel (0) target = $region13
    $region12: #{tpu_custom_call.1} parent=1 // pred_region
      %26 = dma.done [#allocation4], 16
    $region13: #{tpu_custom_call.1} parent=1 // pred_fallthru
      _
    %27 = vsyncpa [#allocation4], 1

</llo_original>
